<compile_context>
chip_gen: v7x
topology: tpu7x:2x2x1
jax: 0.10.0
libtpu: 0.0.40
codegen_flags: <defaults>
</compile_context>

<pallas_src>
import numpy as np
import jax
import jax.numpy as jnp
from jax.experimental import pallas as pl
from jax.experimental.pallas import tpu as pltpu  # noqa: F401  (TPU-specific tuning hooks)

# ---------------- static configuration (small, consistent with the module) ----
B = 2            # batch
VOCAB = 32       # vocabulary size (synthetic GloVe table)
G = 16           # glove_dim
H = 32           # h_dim
Q_LEN = 10       # query length
POOL_Q = 8       # pooling_size_query -> (Q_LEN-2)//POOL_Q == 1 window, linear_query sees (B, H)
D_LEN = 16       # max_d_len
POOL_D = 4       # pooling_size_doc (stride=1)
Q_CONV = Q_LEN - 2               # conv1d_query output length = 8
D_CONV = D_LEN - 2               # conv1d_doc_0 output length = 14
N_WIN = D_LEN - POOL_D - 1       # n_pooling_windows = D_CONV - POOL_D + 1 = 11

assert Q_CONV == POOL_Q, "linear_query in-features == h_dim requires exactly one query pool window"
assert N_WIN == D_CONV - POOL_D + 1

# row layout of the packed (activation) matrix fed to stage 1
M_Q = B * Q_CONV                 # 16 query rows, batch-major: row = b*Q_CONV + p
M_D = B * D_CONV                 # 28 doc rows, position-major: row = p*B + b
M1 = M_Q + M_D                   # 44
M2 = N_WIN * B + B               # 24 rows for stage 2: [d_pool (22, pos-major) ; q_pool (2)]

# static row offsets inside the packed weight blob (all multiples of 16 -> bf16 sublane aligned)
OFF_W1 = 0                       # (3G, 2H)   [conv1d_query | conv1d_doc_0]
OFF_W2 = OFF_W1 + 3 * G          # (H, 2H)    [linear_query | conv1d_doc_1]
OFF_WC0 = OFF_W2 + H             # (N_WIN*H, 2H)  comb_linear_0 (cols H:2H are zero pad)
OFF_WC1 = OFF_WC0 + N_WIN * H    # (H, 2H)    comb_linear_1   (cols H:2H are zero pad)
W_ROWS = OFF_WC1 + H             # 464 total rows

PREC_REF = jax.lax.Precision.HIGHEST   # reference only; kernel runs explicit bf16 on the MXU


# ------------------------------- Pallas kernel --------------------------------
def duet_kernel(a1_ref, w_ref, b_ref, out_ref):
    # a1_ref: (M1, 3G) bf16   rows 0:16  = query im2col (batch-major, row = b*Q_CONV + p)
    #                         rows 16:44 = doc   im2col (position-major, row = p*B + b)
    # w_ref:  (W_ROWS, 2H) bf16  packed weight blob (channels-last, see pack_params)
    # b_ref:  (4, 2H) f32     rows: [bq|bd0], [blq|bd1], [bc0|0], [bc1|0]
    # out_ref: (B, H) f32
    bias1 = b_ref[0:1, :]                      # (1, 2H)
    bias2 = b_ref[1:2, :]
    bc0 = b_ref[2:3, 0:H]                      # (1, H)
    bc1 = b_ref[3:4, 0:H]

    def mm(a, w):
        return jnp.dot(a, w, preferred_element_type=jnp.float32)

    # ---- stage 1: both k=3 convs as ONE im2col matmul (N-packed weights) ----
    s1 = jnp.maximum(mm(a1_ref[...], w_ref[OFF_W1:OFF_W1 + 3 * G, :]) + bias1, 0.0)   # (44, 64) f32
    q_conv = s1[0:M_Q, 0:H]                    # (16, 32)  query conv+relu (batch-major)
    d_conv = s1[M_Q:M_Q + M_D, H:2 * H]        # (28, 32)  doc conv+relu (position-major), 8-aligned start

    # query MaxPool1d(POOL_Q): one window per batch -> layout-preserving reshape + sublane reduce
    q_pool = jnp.max(q_conv.reshape(B, POOL_Q, H), axis=1)                             # (B, H)

    # doc MaxPool1d(POOL_D, stride=1) on position-major rows: shifted maxima
    d_pool = d_conv[0:N_WIN * B, :]
    for j in range(1, POOL_D):
        d_pool = jnp.maximum(d_pool, d_conv[j * B:j * B + N_WIN * B, :])               # (22, 32) rows = w*B + b

    # ---- stage 2: linear_query + conv1d_doc_1 (k=1) as ONE N-packed matmul ----
    a2 = jnp.concatenate([d_pool, q_pool], axis=0).astype(jnp.bfloat16)                # (24, 32)
    s2 = jnp.maximum(mm(a2, w_ref[OFF_W2:OFF_W2 + H, :]) + bias2, 0.0)                 # (24, 64) f32
    d1 = s2[0:N_WIN * B, H:2 * H]              # (22, 32) doc features (rows = w*B + b)
    q_vec = s2[N_WIN * B:N_WIN * B + B, 0:H]   # (B, 32)  query features

    # ---- combine: (q.unsqueeze(-1) * d) flattened, feature index = w*H + h ----
    # TODO(synk): nn.Dropout layers are identity in eval mode; training-mode dropout
    #             (PRNG masking + scaling) is not implemented here.
    pieces = [q_vec * d1[w * B:(w + 1) * B, :] for w in range(N_WIN)]                  # each (B, H)
    # NOTE: a (N_WIN,B,H)->(B,N_WIN*H) reshape is not layout-preserving in Mosaic at
    # these sizes; the lane-axis concatenate is the reliably-lowered form.
    x_flat = jnp.concatenate(pieces, axis=1).astype(jnp.bfloat16)                      # (B, N_WIN*H)

    # ---- comb_linear_0 (ONE K=N_WIN*H matmul) and comb_linear_1 ----
    h0 = jnp.maximum(mm(x_flat, w_ref[OFF_WC0:OFF_WC0 + N_WIN * H, 0:H]) + bc0, 0.0)   # (B, H) f32
    h1 = jnp.maximum(mm(h0.astype(jnp.bfloat16),
                        w_ref[OFF_WC1:OFF_WC1 + H, 0:H]) + bc1, 0.0)                   # (B, H) f32
    out_ref[...] = h1


# ------------------------ one-time parameter packing ---------------------------
def pack_params(P):
    """Repack PyTorch-convention weights ONCE (hoisted out of the per-call path).

    conv weight (Cout, Cin, K) -> (K*Cin, Cout)  (matches im2col feature order k*G+g)
    linear weight (out, in)    -> (in, out)
    comb_linear_0 (H, H*N_WIN) -> rows permuted to w*H+h (torch flatten is h*N_WIN+w)
    Independent weights are packed along N so stages 1 and 2 are single matmuls.
    """
    f32 = jnp.float32
    wq_k = jnp.transpose(P['wq'], (2, 1, 0)).reshape(3 * G, H)
    wd0_k = jnp.transpose(P['wd0'], (2, 1, 0)).reshape(3 * G, H)
    wlq_k = P['wlq'].T
    wd1_k = P['wd1'][:, :, 0].T
    wc0_k = jnp.transpose(P['wc0'].reshape(H, H, N_WIN), (2, 1, 0)).reshape(N_WIN * H, H)
    wc1_k = P['wc1'].T

    zc0 = jnp.zeros((N_WIN * H, H), f32)
    zc1 = jnp.zeros((H, H), f32)
    w_blob = jnp.concatenate([
        jnp.concatenate([wq_k, wd0_k], axis=1),    # rows   0: 48  stage 1  [Wq  | Wd0]
        jnp.concatenate([wlq_k, wd1_k], axis=1),   # rows  48: 80  stage 2  [Wlq | Wd1]
        jnp.concatenate([wc0_k, zc0], axis=1),     # rows  80:432  comb_linear_0 | zero pad
        jnp.concatenate([wc1_k, zc1], axis=1),     # rows 432:464  comb_linear_1 | zero pad
    ], axis=0).astype(jnp.bfloat16)                # (464, 64)
    assert w_blob.shape == (W_ROWS, 2 * H)

    zb = jnp.zeros((H,), f32)
    b_blob = jnp.stack([
        jnp.concatenate([P['bq'], P['bd0']]),
        jnp.concatenate([P['blq'], P['bd1']]),
        jnp.concatenate([P['bc0'], zb]),
        jnp.concatenate([P['bc1'], zb]),
    ], axis=0).astype(f32)                         # (4, 64)

    return dict(emb=P['emb'].astype(jnp.bfloat16), w=w_blob, b=b_blob)


# --------------------------------- wrapper -------------------------------------
def duet_forward(query, doc, packed):
    emb = packed['emb']                         # (VOCAB, G) bf16 — gather stays in XLA
    q_emb = emb[query]                          # (B, Q_LEN, G)
    d_emb = emb[doc]                            # (B, D_LEN, G)

    # im2col (features [tap0|tap1|tap2]*G); query batch-major, doc position-major
    q_un = jnp.concatenate([q_emb[:, k:k + Q_CONV, :] for k in range(3)],
                           axis=-1).reshape(M_Q, 3 * G)
    d_un = jnp.transpose(
        jnp.concatenate([d_emb[:, k:k + D_CONV, :] for k in range(3)], axis=-1),
        (1, 0, 2)).reshape(M_D, 3 * G)
    a1 = jnp.concatenate([q_un, d_un], axis=0)  # (44, 48) bf16

    # single invocation, everything resident in VMEM (< 100 KB total)
    # TODO(synk): for a real batch (B >> 2) add a leading grid axis over batch chunks
    #             with dimension_semantics=("parallel",) so both v7x TensorCores get work.
    return pl.pallas_call(
        duet_kernel,
        out_shape=jax.ShapeDtypeStruct((B, H), jnp.float32),
    )(a1, packed['w'], packed['b'])


# --------------------------- deterministic parameters ---------------------------
def init_params(key):
    ks = jax.random.split(key, 13)

    def u(k, shape, scale=0.1):
        return jax.random.uniform(k, shape, jnp.float32, -scale, scale)

    emb = u(ks[0], (VOCAB, G), 0.25)
    emb = emb.at[0].set(0.0)  # padding_idx = 0  (GloVe table replaced by random init)
    return dict(
        emb=emb,
        wq=u(ks[1], (H, G, 3)),   bq=u(ks[2], (H,)),
        wlq=u(ks[3], (H, H)),     blq=u(ks[4], (H,)),
        wd0=u(ks[5], (H, G, 3)),  bd0=u(ks[6], (H,)),
        wd1=u(ks[7], (H, H, 1)),  bd1=u(ks[8], (H,)),
        wc0=u(ks[9], (H, H * N_WIN)), bc0=u(ks[10], (H,)),
        wc1=u(ks[11], (H, H)),    bc1=u(ks[12], (H,)),
    )


# ------------------- pure-JAX reference in PyTorch conventions -------------------
def torch_reference(query, doc, P):
    qe = jnp.transpose(P['emb'][query], (0, 2, 1))   # (B, G, Q_LEN)  (NCL, like torch)
    de = jnp.transpose(P['emb'][doc], (0, 2, 1))     # (B, G, D_LEN)

    def conv1d(x, w, bias):
        y = jax.lax.conv_general_dilated(x, w, (1,), 'VALID',
                                         dimension_numbers=('NCH', 'OIH', 'NCH'),
                                         precision=PREC_REF)
        return y + bias[None, :, None]

    q = jax.nn.relu(conv1d(qe, P['wq'], P['bq']))                 # (B, H, Q_CONV)
    q = jnp.max(q[:, :, :(Q_CONV // POOL_Q) * POOL_Q]
                .reshape(B, H, -1, POOL_Q), axis=-1)              # MaxPool1d(POOL_Q)
    q = q.reshape(B, -1)                                          # flatten -> (B, H)
    q = jax.nn.relu(jnp.dot(q, P['wlq'].T, precision=PREC_REF) + P['blq'])

    d = jax.nn.relu(conv1d(de, P['wd0'], P['bd0']))               # (B, H, D_CONV)
    d = jnp.stack([jnp.max(d[:, :, t:t + POOL_D], axis=-1)
                   for t in range(N_WIN)], axis=-1)               # MaxPool1d(POOL_D, stride=1)
    d = jax.nn.relu(conv1d(d, P['wd1'], P['bd1']))                # (B, H, N_WIN)

    x = q[:, :, None] * d
    x = x.reshape(B, -1)                                          # torch flatten: h*N_WIN + w
    x = jax.nn.relu(jnp.dot(x, P['wc0'].T, precision=PREC_REF) + P['bc0'])
    x = jax.nn.relu(jnp.dot(x, P['wc1'].T, precision=PREC_REF) + P['bc1'])
    return x


if __name__ == "__main__":
    key = jax.random.PRNGKey(0)
    kq, kd, kp = jax.random.split(key, 3)
    params = init_params(kp)
    packed = pack_params(params)                 # one-time repacking (hoisted out of forward)
    query = jax.random.randint(kq, (B, Q_LEN), 0, VOCAB)
    doc = jax.random.randint(kd, (B, D_LEN), 0, VOCAB)

    fwd = jax.jit(duet_forward)
    out = jax.block_until_ready(fwd(query, doc, packed))
    ref = torch_reference(query, doc, params)

    assert out.shape == (B, H)
    # Kernel runs explicit bf16 inputs with f32 accumulation; the reference runs
    # HIGHEST-precision f32 — tolerance set to bf16-rounding level across 5 layers.
    np.testing.assert_allclose(np.asarray(out), np.asarray(ref), rtol=3e-2, atol=3e-3)
    print("KERNEL_OK")
</pallas_src>

<mosaic_0001>
module attributes {stable_mosaic.version = 11 : i64} {
  func.func @duet_kernel(%arg0: memref<44x48xbf16, #tpu.memory_space<vmem>>, %arg1: memref<464x64xbf16, #tpu.memory_space<vmem>>, %arg2: memref<4x64xf32, #tpu.memory_space<vmem>>, %arg3: memref<2x32xf32, #tpu.memory_space<vmem>>) attributes {dimension_semantics = [], scalar_prefetch = 0 : i64, scratch_operands = 0 : i64, tpu.core_type = #tpu.core_type<tc>} {
    %c0 = arith.constant 0 : index
    %c0_0 = arith.constant 0 : index
    %0 = vector.load %arg2[%c0, %c0_0] : memref<4x64xf32, #tpu.memory_space<vmem>>, vector<1x64xf32>
    %c1 = arith.constant 1 : index
    %c0_1 = arith.constant 0 : index
    %1 = vector.load %arg2[%c1, %c0_1] : memref<4x64xf32, #tpu.memory_space<vmem>>, vector<1x64xf32>
    %c2 = arith.constant 2 : index
    %c0_2 = arith.constant 0 : index
    %2 = vector.load %arg2[%c2, %c0_2] : memref<4x64xf32, #tpu.memory_space<vmem>>, vector<1x32xf32>
    %c3 = arith.constant 3 : index
    %c0_3 = arith.constant 0 : index
    %3 = vector.load %arg2[%c3, %c0_3] : memref<4x64xf32, #tpu.memory_space<vmem>>, vector<1x32xf32>
    %c0_4 = arith.constant 0 : index
    %c0_5 = arith.constant 0 : index
    %4 = vector.load %arg0[%c0_4, %c0_5] : memref<44x48xbf16, #tpu.memory_space<vmem>>, vector<44x48xbf16>
    %c0_6 = arith.constant 0 : index
    %c0_7 = arith.constant 0 : index
    %5 = vector.load %arg1[%c0_6, %c0_7] : memref<464x64xbf16, #tpu.memory_space<vmem>>, vector<48x64xbf16>
    %cst = arith.constant dense<0.000000e+00> : vector<44x64xf32>
    %6 = tpu.matmul %4, %5, %cst {dimension_numbers = #tpu.dot_dimension_numbers<[1], [0], [0], [1], [0, 0, 1, 1], [], []>} : vector<44x48xbf16>, vector<48x64xbf16>, vector<44x64xf32> -> vector<44x64xf32>
    %7 = vector.broadcast %0 : vector<1x64xf32> to vector<44x64xf32>
    %8 = arith.addf %6, %7 : vector<44x64xf32>
    %cst_8 = arith.constant 0.000000e+00 : f32
    %9 = vector.broadcast %cst_8 : f32 to vector<44x64xf32>
    %10 = arith.maximumf %8, %9 : vector<44x64xf32>
    %11 = vector.extract_strided_slice %10 {offsets = [0, 0], sizes = [16, 32], strides = [1, 1]} : vector<44x64xf32> to vector<16x32xf32>
    %12 = vector.extract_strided_slice %10 {offsets = [16, 32], sizes = [28, 32], strides = [1, 1]} : vector<44x64xf32> to vector<28x32xf32>
    %13 = vector.shape_cast %11 : vector<16x32xf32> to vector<2x8x32xf32>
    %cst_9 = arith.constant dense<0xFF800000> : vector<2x32xf32>
    %14 = vector.multi_reduction <maximumf>, %13, %cst_9 [1] : vector<2x8x32xf32> to vector<2x32xf32>
    %15 = vector.extract_strided_slice %12 {offsets = [0, 0], sizes = [22, 32], strides = [1, 1]} : vector<28x32xf32> to vector<22x32xf32>
    %16 = vector.extract_strided_slice %12 {offsets = [2, 0], sizes = [22, 32], strides = [1, 1]} : vector<28x32xf32> to vector<22x32xf32>
    %17 = arith.maximumf %15, %16 : vector<22x32xf32>
    %18 = vector.extract_strided_slice %12 {offsets = [4, 0], sizes = [22, 32], strides = [1, 1]} : vector<28x32xf32> to vector<22x32xf32>
    %19 = arith.maximumf %17, %18 : vector<22x32xf32>
    %20 = vector.extract_strided_slice %12 {offsets = [6, 0], sizes = [22, 32], strides = [1, 1]} : vector<28x32xf32> to vector<22x32xf32>
    %21 = arith.maximumf %19, %20 : vector<22x32xf32>
    %22 = tpu.concatenate %21, %14 in 0 : vector<22x32xf32>, vector<2x32xf32> -> vector<24x32xf32>
    %23 = arith.truncf %22 : vector<24x32xf32> to vector<24x32xbf16>
    %c48 = arith.constant 48 : index
    %c0_10 = arith.constant 0 : index
    %24 = vector.load %arg1[%c48, %c0_10] : memref<464x64xbf16, #tpu.memory_space<vmem>>, vector<32x64xbf16>
    %cst_11 = arith.constant dense<0.000000e+00> : vector<24x64xf32>
    %25 = tpu.matmul %23, %24, %cst_11 {dimension_numbers = #tpu.dot_dimension_numbers<[1], [0], [0], [1], [0, 0, 1, 1], [], []>} : vector<24x32xbf16>, vector<32x64xbf16>, vector<24x64xf32> -> vector<24x64xf32>
    %26 = vector.broadcast %1 : vector<1x64xf32> to vector<24x64xf32>
    %27 = arith.addf %25, %26 : vector<24x64xf32>
    %cst_12 = arith.constant 0.000000e+00 : f32
    %28 = vector.broadcast %cst_12 : f32 to vector<24x64xf32>
    %29 = arith.maximumf %27, %28 : vector<24x64xf32>
    %30 = vector.extract_strided_slice %29 {offsets = [0, 32], sizes = [22, 32], strides = [1, 1]} : vector<24x64xf32> to vector<22x32xf32>
    %31 = vector.extract_strided_slice %29 {offsets = [22, 0], sizes = [2, 32], strides = [1, 1]} : vector<24x64xf32> to vector<2x32xf32>
    %32 = vector.extract_strided_slice %30 {offsets = [0, 0], sizes = [2, 32], strides = [1, 1]} : vector<22x32xf32> to vector<2x32xf32>
    %33 = arith.mulf %31, %32 : vector<2x32xf32>
    %34 = vector.extract_strided_slice %30 {offsets = [2, 0], sizes = [2, 32], strides = [1, 1]} : vector<22x32xf32> to vector<2x32xf32>
    %35 = arith.mulf %31, %34 : vector<2x32xf32>
    %36 = vector.extract_strided_slice %30 {offsets = [4, 0], sizes = [2, 32], strides = [1, 1]} : vector<22x32xf32> to vector<2x32xf32>
    %37 = arith.mulf %31, %36 : vector<2x32xf32>
    %38 = vector.extract_strided_slice %30 {offsets = [6, 0], sizes = [2, 32], strides = [1, 1]} : vector<22x32xf32> to vector<2x32xf32>
    %39 = arith.mulf %31, %38 : vector<2x32xf32>
    %40 = vector.extract_strided_slice %30 {offsets = [8, 0], sizes = [2, 32], strides = [1, 1]} : vector<22x32xf32> to vector<2x32xf32>
    %41 = arith.mulf %31, %40 : vector<2x32xf32>
    %42 = vector.extract_strided_slice %30 {offsets = [10, 0], sizes = [2, 32], strides = [1, 1]} : vector<22x32xf32> to vector<2x32xf32>
    %43 = arith.mulf %31, %42 : vector<2x32xf32>
    %44 = vector.extract_strided_slice %30 {offsets = [12, 0], sizes = [2, 32], strides = [1, 1]} : vector<22x32xf32> to vector<2x32xf32>
    %45 = arith.mulf %31, %44 : vector<2x32xf32>
    %46 = vector.extract_strided_slice %30 {offsets = [14, 0], sizes = [2, 32], strides = [1, 1]} : vector<22x32xf32> to vector<2x32xf32>
    %47 = arith.mulf %31, %46 : vector<2x32xf32>
    %48 = vector.extract_strided_slice %30 {offsets = [16, 0], sizes = [2, 32], strides = [1, 1]} : vector<22x32xf32> to vector<2x32xf32>
    %49 = arith.mulf %31, %48 : vector<2x32xf32>
    %50 = vector.extract_strided_slice %30 {offsets = [18, 0], sizes = [2, 32], strides = [1, 1]} : vector<22x32xf32> to vector<2x32xf32>
    %51 = arith.mulf %31, %50 : vector<2x32xf32>
    %52 = vector.extract_strided_slice %30 {offsets = [20, 0], sizes = [2, 32], strides = [1, 1]} : vector<22x32xf32> to vector<2x32xf32>
    %53 = arith.mulf %31, %52 : vector<2x32xf32>
    %54 = tpu.concatenate %33, %35, %37, %39, %41, %43, %45, %47, %49, %51, %53 in 1 : vector<2x32xf32>, vector<2x32xf32>, vector<2x32xf32>, vector<2x32xf32>, vector<2x32xf32>, vector<2x32xf32>, vector<2x32xf32>, vector<2x32xf32>, vector<2x32xf32>, vector<2x32xf32>, vector<2x32xf32> -> vector<2x352xf32>
    %55 = arith.truncf %54 : vector<2x352xf32> to vector<2x352xbf16>
    %c80 = arith.constant 80 : index
    %c0_13 = arith.constant 0 : index
    %56 = vector.load %arg1[%c80, %c0_13] : memref<464x64xbf16, #tpu.memory_space<vmem>>, vector<352x32xbf16>
    %cst_14 = arith.constant dense<0.000000e+00> : vector<2x32xf32>
    %57 = tpu.matmul %55, %56, %cst_14 {dimension_numbers = #tpu.dot_dimension_numbers<[1], [0], [0], [1], [0, 0, 1, 1], [], []>} : vector<2x352xbf16>, vector<352x32xbf16>, vector<2x32xf32> -> vector<2x32xf32>
    %58 = vector.broadcast %2 : vector<1x32xf32> to vector<2x32xf32>
    %59 = arith.addf %57, %58 : vector<2x32xf32>
    %cst_15 = arith.constant 0.000000e+00 : f32
    %60 = vector.broadcast %cst_15 : f32 to vector<2x32xf32>
    %61 = arith.maximumf %59, %60 : vector<2x32xf32>
    %62 = arith.truncf %61 : vector<2x32xf32> to vector<2x32xbf16>
    %c432 = arith.constant 432 : index
    %c0_16 = arith.constant 0 : index
    %63 = vector.load %arg1[%c432, %c0_16] : memref<464x64xbf16, #tpu.memory_space<vmem>>, vector<32x32xbf16>
    %cst_17 = arith.constant dense<0.000000e+00> : vector<2x32xf32>
    %64 = tpu.matmul %62, %63, %cst_17 {dimension_numbers = #tpu.dot_dimension_numbers<[1], [0], [0], [1], [0, 0, 1, 1], [], []>} : vector<2x32xbf16>, vector<32x32xbf16>, vector<2x32xf32> -> vector<2x32xf32>
    %65 = vector.broadcast %3 : vector<1x32xf32> to vector<2x32xf32>
    %66 = arith.addf %64, %65 : vector<2x32xf32>
    %cst_18 = arith.constant 0.000000e+00 : f32
    %67 = vector.broadcast %cst_18 : f32 to vector<2x32xf32>
    %68 = arith.maximumf %66, %67 : vector<2x32xf32>
    %c0_19 = arith.constant 0 : index
    %c0_20 = arith.constant 0 : index
    %69 = vector.load %arg3[%c0_19, %c0_20] : memref<2x32xf32, #tpu.memory_space<vmem>>, vector<2x32xf32>
    tpu.vector_store %arg3[%c0_19, %c0_20], %68 {strides = array<i32>} : memref<2x32xf32, #tpu.memory_space<vmem>>, vector<2x32xf32>,
    return
  }
}

</mosaic_0001>

<llo_original>
// kernel: duet_forward.1
$region0: #{duet_forward.1}
  #allocation0 [shape = 'u32[]', space=smem, size = 0x4, offset = 0x4, fixed_abs, tag = 'smem constant byte address 0x4 - core index']
  #allocation1 [shape = 'u32[144,128]{1,0:T(1,128)}', space=vmem, size = 0x12000, scoped, tag = 'internal scratch']
  %s0 = inlined_call_operand.vmem [shape: bf16[44,48], index: 0, kind: input, shape index: {}]
  %s1 = inlined_call_operand.vmem [shape: bf16[464,64], index: 1, kind: input, shape index: {}]
  %s2 = inlined_call_operand.vmem [shape: f32[4,64], index: 2, kind: input, shape index: {}]
  %s3 = inlined_call_operand.hbm [shape: f32[2,32], index: 3, kind: output, shape index: {}]
  %s4 = sld [smem:[#allocation0]]
  $region22: #{duet_forward.1} parent=0
    _
  %s6 = ssub.s32 1, %s4
  %s7 = scalar_select 0, %s6, %s4
  $region1: #{duet_forward.1} parent=0
    #allocation2 [shape = 'u8[1024]{0}', space=vmem, size = 0x400, scoped, tag = 'output window, operand 0, single buffered']
    #allocation3 [shape = 's32[1]{0}', space=sflag, size = 0x4, scoped, tag = 'scoped memory for duet_forward.1']
    %8 = vsyncpa [#allocation3], 0
    // Predicated region
    $region2: #{duet_forward.1} parent=1 // pred_check
      _
    $region3: #{duet_forward.1} parent=1 // pred_check_branch
      %10 = sbr.rel (0) target = $region5
    $region4: #{duet_forward.1} parent=1 // pred_region
      _
    $region5: #{duet_forward.1} parent=1 // pred_fallthru
      _
    // Predicated region
    $region6: #{duet_forward.1} parent=1 // pred_check
      _
    $region7: #{duet_forward.1} parent=1 // pred_check_branch
      %12 = sbr.rel (0) target = $region9
    $region8: #{duet_forward.1} parent=1 // pred_region
      _
    $region9: #{duet_forward.1} parent=1 // pred_fallthru
      _
    // Predicated region
    $region10: #{duet_forward.1} parent=1 // pred_check
      _
    $region11: #{duet_forward.1} parent=1 // pred_check_branch
      %14 = sbr.rel (0) target = $region13
    $region12: #{duet_forward.1} parent=1 // pred_region
      _
    $region13: #{duet_forward.1} parent=1 // pred_fallthru
      _
    %v16 = vld [vmem:[%s2] sm:$0x1]
    %v17 = vld [vmem:[%s2 + $0x1] sm:$0x1]
    %v18 = vld [vmem:[%s2 + $0x2] sm:$0x1]
    %v19 = vld [vmem:[%s2 + $0x3] sm:$0x1]
    %v20 = vld [vmem:[%s0] sm:$0xf]
    %v21 = vld [vmem:[%s0 + $0x4] sm:$0xf]
    %v22 = vld [vmem:[%s0 + $0x8] sm:$0xf]
    %v23 = vld [vmem:[%s0 + $0xc] sm:$0xf]
    %v24 = vld [vmem:[%s0 + $0x10] sm:$0xf]
    %v25 = vld [vmem:[%s0 + $0x14] sm:$0x3]
    %v26 = vld [vmem:[%s1] sm:$0xf]
    %v27 = vld [vmem:[%s1 + $0x4] sm:$0xf]
    %v28 = vld [vmem:[%s1 + $0x8] sm:$0xf]
    %v29 = vld [vmem:[%s1 + $0xc] sm:$0xf]
    %v30 = vld [vmem:[%s1 + $0x10] sm:$0xf]
    %v31 = vld [vmem:[%s1 + $0x14] sm:$0xf]
    %v32 = vlaneseq
    %v33 = vshrl.u32 %v32, 7
    %v34 = vsub.s32 0, %v33
    %v35 = vrot.slane %v16, %v34
    %v42 = vunpack.c.l.b16 %v20
    %v43 = vunpack.c.l.b16 %v21
    %v44 = vunpack.c.l.b16 %v22
    %v45 = vunpack.c.l.b16 %v23
    %v46 = vunpack.c.l.b16 %v24
    %v47 = vunpack.c.l.b16 %v25
    %v48 = vpack.c.b16 %v43, %v42
    %v49 = vpack.c.b16 %v45, %v44
    %v50 = vpack.c.b16 %v47, %v46
    %v57 = vunpack.c.l.b16 %v26
    %v58 = vunpack.c.l.b16 %v27
    %v59 = vunpack.c.l.b16 %v28
    %v60 = vunpack.c.l.b16 %v29
    %v61 = vunpack.c.l.b16 %v30
    %v62 = vunpack.c.l.b16 %v31
    %v63 = vpack.c.b16 %v58, %v57
    %v64 = vpack.c.b16 %v60, %v59
    %v65 = vpack.c.b16 %v62, %v61
    %vm69 = vcmask 392192
    %v71 = vsel %vm69, %v48, 0
    %v74 = vsel %vm69, %v49, 0
    %v77 = vsel %vm69, %v50, 0
    %79 = vmatprep.subr.bf16.mxu0 0
    %80 = vmatpush1.bf16.msra.mxu0 %v63
    %81 = vmatprep.subr.bf16.mxu0 0
    %82 = vmatpush1.bf16.msra.mxu0 %v64
    %83 = vmatprep.subr.bf16.mxu0 0
    %84 = vmatpush1.bf16.msra.mxu0 %v65
    %85 = vmatprep.subr.bf16.mxu0 0
    %86 = vmatpush1.bf16.msra.mxu0 0
    %87 = vmatprep.subr.bf16.mxu0 0
    %88 = vmatpush1.bf16.msra.mxu0 0
    %89 = vmatprep.subr.bf16.mxu0 0
    %90 = vmatpush1.bf16.msra.mxu0 0
    %91 = vmatprep.subr.bf16.mxu0 0
    %92 = vmatpush1.bf16.msra.mxu0 0
    %93 = vmatprep.subr.bf16.mxu0 0
    %94 = vmatpush1.bf16.msra.mxu0 0
    %95 = vmatprep.subr.bf16.mxu0 0
    %96 = vmatpush1.bf16.msra.mxu0 0
    %97 = vmatprep.subr.bf16.mxu0 0
    %98 = vmatpush1.bf16.msra.mxu0 0
    %99 = vmatprep.subr.bf16.mxu0 0
    %100 = vmatpush1.bf16.msra.mxu0 0
    %101 = vmatprep.subr.bf16.mxu0 0
    %102 = vmatpush1.bf16.msra.mxu0 0
    %103 = vmatprep.subr.bf16.mxu0 0
    %104 = vmatpush1.bf16.msra.mxu0 0
    %105 = vmatprep.subr.bf16.mxu0 0
    %106 = vmatpush1.bf16.msra.mxu0 0
    %107 = vmatprep.subr.bf16.mxu0 0
    %108 = vmatpush1.bf16.msra.mxu0 0
    %109 = vmatprep.subr.bf16.mxu0 0
    %110 = vmatpush1.bf16.msra.mxu0 0
    %111 = vmatprep.mubr.bf16.mxu0 0
    %112 = vmatmul.mubr.bf16.gmra.mrb[0].mxu0 %v71
    %v113 = vpop.f32.mrb[0].mxu0
    %v114 = vadd.f32 %v35, %v113
    %v115 = vpop.f32.mrb[0].mxu0
    %v116 = vpop.f32.mrb[0].mxu0
    %v117 = vadd.f32 %v35, %v116
    %v118 = vpop.f32.mrb[0].mxu0
    %119 = vmatprep.mubr.bf16.mxu0 0
    %120 = vmatmul.mubr.bf16.gmra.mrb[0].mxu0 %v74
    %v121 = vpop.f32.mrb[0].mxu0
    %v122 = vadd.f32 %v35, %v121
    %v123 = vpop.f32.mrb[0].mxu0
    %v124 = vpop.f32.mrb[0].mxu0
    %v125 = vadd.f32 %v35, %v124
    %v126 = vpop.f32.mrb[0].mxu0
    %127 = vmatprep.mubr.bf16.mxu0 0
    %128 = vmatmul.mubr.bf16.gmra.mrb[0].mxu0 %v77
    %v129 = vpop.f32.mrb[0].mxu0
    %v130 = vadd.f32 %v35, %v129
    %v131 = vpop.f32.mrb[0].mxu0
    %v132 = vpop.f32.mrb[0].mxu0
    %v133 = vadd.f32 %v35, %v132
    %v134 = vpop.f32.mrb[0].mxu0
    %135 = vdwg.mxu0
    %v136 = vmax.f32 %v114, 0.0
    %v137 = vmax.f32 %v117, 0.0
    %v138 = vmax.f32 %v122, 0.0
    %v139 = vmax.f32 %v125, 0.0
    %v140 = vmax.f32 %v130, 0.0
    %v141 = vmax.f32 %v133, 0.0
    %vm142 = vcmask 261120
    %v143 = vsel %vm142, %v136, -inf
    %v144 = vrot.slane %v143, 4
    %v145 = vmax.f32 %v143, %v144
    %v146 = vrot.slane %v145, 2
    %v147 = vmax.f32 %v145, %v146
    %v148 = vrot.slane %v147, 1
    %v149 = vmax.f32 %v147, %v148
    %v150 = vsel %vm142, %v137, -inf
    %v151 = vrot.slane %v150, 4
    %v152 = vmax.f32 %v150, %v151
    %v153 = vrot.slane %v152, 2
    %v154 = vmax.f32 %v152, %v153
    %v155 = vrot.slane %v154, 1
    %v156 = vmax.f32 %v154, %v155
    %vm160 = vcmask 1045504
    %v161 = vrot.slane %v138, 2
    %v162 = vrot.slane %v139, 2
    %v163 = vsel %vm160, %v161, %v162
    %v164 = vrot.slane %v140, 2
    %v165 = vsel %vm160, %v162, %v164
    %v169 = vmax.f32 %v138, %v163
    %v170 = vmax.f32 %v139, %v165
    %v171 = vmax.f32 %v140, %v164
    %vm173 = vcmask 1043456
    %v174 = vrot.slane %v138, 4
    %v175 = vrot.slane %v139, 4
    %v176 = vsel %vm173, %v174, %v175
    %v177 = vrot.slane %v140, 4
    %v178 = vsel %vm173, %v175, %v177
    %v179 = vrot.slane %v141, 4
    %v180 = vsel %vm173, %v177, %v179
    %v184 = vmax.f32 %v169, %v176
    %v185 = vmax.f32 %v170, %v178
    %v186 = vmax.f32 %v171, %v180
    %vm187 = vcmask 1041408
    %v188 = vrot.slane %v138, 6
    %v189 = vrot.slane %v139, 6
    %v190 = vsel %vm187, %v188, %v189
    %v191 = vrot.slane %v140, 6
    %v192 = vsel %vm187, %v189, %v191
    %v193 = vrot.slane %v141, 6
    %v194 = vsel %vm187, %v191, %v193
    %v198 = vmax.f32 %v184, %v190
    %v199 = vmax.f32 %v185, %v192
    %v200 = vmax.f32 %v186, %v194
    %vm203 = vcmask 1047559
    %v204 = vsel %vm203, %v156, %v149
    %205 = vrot.lane.b32.xlu0 %v204, 32
    %v206 = vpop.permute.xlu0 %205
    %v208 = vsel %vm160, %v200, %v206
    %v209 = vpack.c.bf16 %v199, %v198
    %v210 = vpack.c.bf16 %v208, %v208
    %v211 = vld [vmem:[%s1 + $0x18] sm:$0xf]
    %v212 = vld [vmem:[%s1 + $0x1c] sm:$0xf]
    %v213 = vld [vmem:[%s1 + $0x20] sm:$0xf]
    %v214 = vld [vmem:[%s1 + $0x24] sm:$0xf]
    %v215 = vlaneseq
    %v216 = vshrl.u32 %v215, 7
    %v217 = vsub.s32 0, %v216
    %v218 = vrot.slane %v17, %v217
    %221 = vrot.lane.b32.xlu0 %v209, 96
    %v222 = vpop.permute.xlu0 %221
    %223 = vrot.lane.b32.xlu0 %v210, 96
    %v224 = vpop.permute.xlu0 %223
    %v229 = vunpack.c.l.b16 %v211
    %v230 = vunpack.c.l.b16 %v212
    %v231 = vunpack.c.l.b16 %v213
    %v232 = vunpack.c.l.b16 %v214
    %v233 = vpack.c.b16 %v230, %v229
    %v234 = vpack.c.b16 %v232, %v231
    %v238 = vsel %vm142, %v222, 0
    %v241 = vsel %vm142, %v224, 0
    %243 = vmatprep.subr.bf16.mxu0 0
    %244 = vmatpush1.bf16.msra.mxu0 %v233
    %245 = vmatprep.subr.bf16.mxu0 0
    %246 = vmatpush1.bf16.msra.mxu0 %v234
    %247 = vmatprep.subr.bf16.mxu0 0
    %248 = vmatpush1.bf16.msra.mxu0 0
    %249 = vmatprep.subr.bf16.mxu0 0
    %250 = vmatpush1.bf16.msra.mxu0 0
    %251 = vmatprep.subr.bf16.mxu0 0
    %252 = vmatpush1.bf16.msra.mxu0 0
    %253 = vmatprep.subr.bf16.mxu0 0
    %254 = vmatpush1.bf16.msra.mxu0 0
    %255 = vmatprep.subr.bf16.mxu0 0
    %256 = vmatpush1.bf16.msra.mxu0 0
    %257 = vmatprep.subr.bf16.mxu0 0
    %258 = vmatpush1.bf16.msra.mxu0 0
    %259 = vmatprep.subr.bf16.mxu0 0
    %260 = vmatpush1.bf16.msra.mxu0 0
    %261 = vmatprep.subr.bf16.mxu0 0
    %262 = vmatpush1.bf16.msra.mxu0 0
    %263 = vmatprep.subr.bf16.mxu0 0
    %264 = vmatpush1.bf16.msra.mxu0 0
    %265 = vmatprep.subr.bf16.mxu0 0
    %266 = vmatpush1.bf16.msra.mxu0 0
    %267 = vmatprep.subr.bf16.mxu0 0
    %268 = vmatpush1.bf16.msra.mxu0 0
    %269 = vmatprep.subr.bf16.mxu0 0
    %270 = vmatpush1.bf16.msra.mxu0 0
    %271 = vmatprep.subr.bf16.mxu0 0
    %272 = vmatpush1.bf16.msra.mxu0 0
    %273 = vmatprep.subr.bf16.mxu0 0
    %274 = vmatpush1.bf16.msra.mxu0 0
    %275 = vmatprep.mubr.bf16.mxu0 0
    %276 = vmatmul.mubr.bf16.gmra.mrb[0].mxu0 %v238
    %v277 = vpop.f32.mrb[0].mxu0
    %v278 = vadd.f32 %v218, %v277
    %v279 = vpop.f32.mrb[0].mxu0
    %v280 = vpop.f32.mrb[0].mxu0
    %v281 = vadd.f32 %v218, %v280
    %v282 = vpop.f32.mrb[0].mxu0
    %283 = vmatprep.mubr.bf16.mxu0 0
    %284 = vmatmul.mubr.bf16.gmra.mrb[0].mxu0 %v241
    %v285 = vpop.f32.mrb[0].mxu0
    %v286 = vadd.f32 %v218, %v285
    %v287 = vpop.f32.mrb[0].mxu0
    %v288 = vpop.f32.mrb[0].mxu0
    %v289 = vpop.f32.mrb[0].mxu0
    %290 = vdwg.mxu0
    %v291 = vmax.f32 %v278, 0.0
    %v292 = vmax.f32 %v281, 0.0
    %v293 = vmax.f32 %v286, 0.0
    %v295 = vrot.slane %v291, 2
    %296 = vrot.lane.b32.xlu0 %v295, 96
    %v297 = vpop.permute.xlu0 %296
    %v299 = vmul.f32 %v293, %v297
    %v300 = vrot.slane %v291, 4
    %301 = vrot.lane.b32.xlu0 %v300, 96
    %v302 = vpop.permute.xlu0 %301
    %v304 = vmul.f32 %v293, %v302
    %v305 = vrot.slane %v291, 6
    %306 = vrot.lane.b32.xlu0 %v305, 96
    %v307 = vpop.permute.xlu0 %306
    %v309 = vmul.f32 %v293, %v307
    %310 = vrot.lane.b32.xlu0 %v291, 96
    %v311 = vpop.permute.xlu0 %310
    %v313 = vmul.f32 %v293, %v311
    %v315 = vrot.slane %v292, 2
    %316 = vrot.lane.b32.xlu0 %v315, 96
    %v317 = vpop.permute.xlu0 %316
    %v319 = vmul.f32 %v293, %v317
    %v320 = vrot.slane %v292, 4
    %321 = vrot.lane.b32.xlu0 %v320, 96
    %v322 = vpop.permute.xlu0 %321
    %v324 = vmul.f32 %v293, %v322
    %v325 = vrot.slane %v292, 6
    %326 = vrot.lane.b32.xlu0 %v325, 96
    %v327 = vpop.permute.xlu0 %326
    %v329 = vmul.f32 %v293, %v327
    %330 = vrot.lane.b32.xlu0 %v292, 96
    %v331 = vpop.permute.xlu0 %330
    %v333 = vmul.f32 %v293, %v331
    %v335 = vrot.slane %v293, 2
    %336 = vrot.lane.b32.xlu0 %v335, 96
    %v337 = vpop.permute.xlu0 %336
    %v339 = vmul.f32 %v293, %v337
    %v340 = vrot.slane %v293, 4
    %341 = vrot.lane.b32.xlu0 %v340, 96
    %v342 = vpop.permute.xlu0 %341
    %v344 = vmul.f32 %v293, %v342
    %v345 = vrot.slane %v293, 6
    %346 = vrot.lane.b32.xlu0 %v345, 96
    %v347 = vpop.permute.xlu0 %346
    %v349 = vmul.f32 %v293, %v347
    %351 = vrot.lane.b32.xlu0 %v304, 32
    %v352 = vpop.permute.xlu0 %351
    %355 = vrot.lane.b32.xlu0 %v309, 64
    %v356 = vpop.permute.xlu0 %355
    %359 = vrot.lane.b32.xlu0 %v313, 96
    %v360 = vpop.permute.xlu0 %359
    %363 = vrot.lane.b32.xlu0 %v324, 32
    %v364 = vpop.permute.xlu0 %363
    %367 = vrot.lane.b32.xlu0 %v329, 64
    %v368 = vpop.permute.xlu0 %367
    %371 = vrot.lane.b32.xlu0 %v333, 96
    %v372 = vpop.permute.xlu0 %371
    %375 = vrot.lane.b32.xlu0 %v344, 32
    %v376 = vpop.permute.xlu0 %375
    %379 = vrot.lane.b32.xlu0 %v349, 64
    %v380 = vpop.permute.xlu0 %379
    %v382 = vsel %vm142, %v299, %v352
    %vm383 = vcmask 523264
    %v384 = vsel %vm383, %v382, %v356
    %vm385 = vcmask 785408
    %v386 = vsel %vm385, %v384, %v360
    %v387 = vsel %vm142, %v319, %v364
    %v388 = vsel %vm383, %v387, %v368
    %v389 = vsel %vm385, %v388, %v372
    %v390 = vsel %vm142, %v339, %v376
    %v391 = vsel %vm383, %v390, %v380
    %v392 = vpack.c.bf16 %v386, %v386
    %v393 = vpack.c.bf16 %v389, %v389
    %v394 = vpack.c.bf16 %v391, %v391
    %v395 = vld [vmem:[%s1 + $0x28] sm:$0xf]
    %v396 = vld [vmem:[%s1 + $0x2c] sm:$0xf]
    %v397 = vld [vmem:[%s1 + $0x30] sm:$0xf]
    %v398 = vld [vmem:[%s1 + $0x34] sm:$0xf]
    %v399 = vld [vmem:[%s1 + $0x38] sm:$0xf]
    %v400 = vld [vmem:[%s1 + $0x3c] sm:$0xf]
    %v401 = vld [vmem:[%s1 + $0x40] sm:$0xf]
    %v402 = vld [vmem:[%s1 + $0x44] sm:$0xf]
    %v403 = vld [vmem:[%s1 + $0x48] sm:$0xf]
    %v404 = vld [vmem:[%s1 + $0x4c] sm:$0xf]
    %v405 = vld [vmem:[%s1 + $0x50] sm:$0xf]
    %v406 = vld [vmem:[%s1 + $0x54] sm:$0xf]
    %v407 = vld [vmem:[%s1 + $0x58] sm:$0xf]
    %v408 = vld [vmem:[%s1 + $0x5c] sm:$0xf]
    %v409 = vld [vmem:[%s1 + $0x60] sm:$0xf]
    %v410 = vld [vmem:[%s1 + $0x64] sm:$0xf]
    %v411 = vld [vmem:[%s1 + $0x68] sm:$0xf]
    %v412 = vld [vmem:[%s1 + $0x6c] sm:$0xf]
    %v413 = vld [vmem:[%s1 + $0x70] sm:$0xf]
    %v414 = vld [vmem:[%s1 + $0x74] sm:$0xf]
    %v415 = vld [vmem:[%s1 + $0x78] sm:$0xf]
    %v416 = vld [vmem:[%s1 + $0x7c] sm:$0xf]
    %v417 = vld [vmem:[%s1 + $0x80] sm:$0xf]
    %v418 = vld [vmem:[%s1 + $0x84] sm:$0xf]
    %v419 = vld [vmem:[%s1 + $0x88] sm:$0xf]
    %v420 = vld [vmem:[%s1 + $0x8c] sm:$0xf]
    %v421 = vld [vmem:[%s1 + $0x90] sm:$0xf]
    %v422 = vld [vmem:[%s1 + $0x94] sm:$0xf]
    %v423 = vld [vmem:[%s1 + $0x98] sm:$0xf]
    %v424 = vld [vmem:[%s1 + $0x9c] sm:$0xf]
    %v425 = vld [vmem:[%s1 + $0xa0] sm:$0xf]
    %v426 = vld [vmem:[%s1 + $0xa4] sm:$0xf]
    %v427 = vld [vmem:[%s1 + $0xa8] sm:$0xf]
    %v428 = vld [vmem:[%s1 + $0xac] sm:$0xf]
    %v429 = vld [vmem:[%s1 + $0xb0] sm:$0xf]
    %v430 = vld [vmem:[%s1 + $0xb4] sm:$0xf]
    %v431 = vld [vmem:[%s1 + $0xb8] sm:$0xf]
    %v432 = vld [vmem:[%s1 + $0xbc] sm:$0xf]
    %v433 = vld [vmem:[%s1 + $0xc0] sm:$0xf]
    %v434 = vld [vmem:[%s1 + $0xc4] sm:$0xf]
    %v435 = vld [vmem:[%s1 + $0xc8] sm:$0xf]
    %v436 = vld [vmem:[%s1 + $0xcc] sm:$0xf]
    %v437 = vld [vmem:[%s1 + $0xd0] sm:$0xf]
    %v438 = vld [vmem:[%s1 + $0xd4] sm:$0xf]
    %v439 = vlaneseq
    %v440 = vshrl.u32 %v439, 7
    %v441 = vsub.s32 0, %v440
    %v442 = vrot.slane %v18, %v441
    %v446 = vrot.slane %v392, 3
    %v447 = vrot.slane %v393, 3
    %v448 = vrot.slane %v394, 3
    %v495 = vunpack.c.l.b16 %v395
    %v496 = vunpack.c.l.b16 %v396
    %v497 = vunpack.c.l.b16 %v397
    %v498 = vunpack.c.l.b16 %v398
    %v499 = vunpack.c.l.b16 %v399
    %v500 = vunpack.c.l.b16 %v400
    %v501 = vunpack.c.l.b16 %v401
    %v502 = vunpack.c.l.b16 %v402
    %v503 = vunpack.c.l.b16 %v403
    %v504 = vunpack.c.l.b16 %v404
    %v505 = vunpack.c.l.b16 %v405
    %v506 = vunpack.c.l.b16 %v406
    %v507 = vunpack.c.l.b16 %v407
    %v508 = vunpack.c.l.b16 %v408
    %v509 = vunpack.c.l.b16 %v409
    %v510 = vunpack.c.l.b16 %v410
    %v511 = vunpack.c.l.b16 %v411
    %v512 = vunpack.c.l.b16 %v412
    %v513 = vunpack.c.l.b16 %v413
    %v514 = vunpack.c.l.b16 %v414
    %v515 = vunpack.c.l.b16 %v415
    %v516 = vunpack.c.l.b16 %v416
    %v517 = vunpack.c.l.b16 %v417
    %v518 = vunpack.c.l.b16 %v418
    %v519 = vunpack.c.l.b16 %v419
    %v520 = vunpack.c.l.b16 %v420
    %v521 = vunpack.c.l.b16 %v421
    %v522 = vunpack.c.l.b16 %v422
    %v523 = vunpack.c.l.b16 %v423
    %v524 = vunpack.c.l.b16 %v424
    %v525 = vunpack.c.l.b16 %v425
    %v526 = vunpack.c.l.b16 %v426
    %v527 = vunpack.c.l.b16 %v427
    %v528 = vunpack.c.l.b16 %v428
    %v529 = vunpack.c.l.b16 %v429
    %v530 = vunpack.c.l.b16 %v430
    %v531 = vunpack.c.l.b16 %v431
    %v532 = vunpack.c.l.b16 %v432
    %v533 = vunpack.c.l.b16 %v433
    %v534 = vunpack.c.l.b16 %v434
    %v535 = vunpack.c.l.b16 %v435
    %v536 = vunpack.c.l.b16 %v436
    %v537 = vunpack.c.l.b16 %v437
    %v538 = vunpack.c.l.b16 %v438
    %v539 = vpack.c.b16 %v496, %v495
    %v540 = vpack.c.b16 %v498, %v497
    %v541 = vpack.c.b16 %v500, %v499
    %v542 = vpack.c.b16 %v502, %v501
    %v543 = vpack.c.b16 %v504, %v503
    %v544 = vpack.c.b16 %v506, %v505
    %v545 = vpack.c.b16 %v508, %v507
    %v546 = vpack.c.b16 %v510, %v509
    %v547 = vpack.c.b16 %v512, %v511
    %v548 = vpack.c.b16 %v514, %v513
    %v549 = vpack.c.b16 %v516, %v515
    %v550 = vpack.c.b16 %v518, %v517
    %v551 = vpack.c.b16 %v520, %v519
    %v552 = vpack.c.b16 %v522, %v521
    %v553 = vpack.c.b16 %v524, %v523
    %v554 = vpack.c.b16 %v526, %v525
    %v555 = vpack.c.b16 %v528, %v527
    %v556 = vpack.c.b16 %v530, %v529
    %v557 = vpack.c.b16 %v532, %v531
    %v558 = vpack.c.b16 %v534, %v533
    %v559 = vpack.c.b16 %v536, %v535
    %v560 = vpack.c.b16 %v538, %v537
    %v584 = vsel %vm385, %v448, 0
    %586 = vmatprep.subr.bf16.mxu0 0
    %587 = vmatpush1.bf16.msra.mxu0 %v539
    %588 = vmatprep.subr.bf16.mxu0 0
    %589 = vmatpush1.bf16.msra.mxu0 %v540
    %590 = vmatprep.subr.bf16.mxu0 0
    %591 = vmatpush1.bf16.msra.mxu0 %v541
    %592 = vmatprep.subr.bf16.mxu0 0
    %593 = vmatpush1.bf16.msra.mxu0 %v542
    %594 = vmatprep.subr.bf16.mxu0 0
    %595 = vmatpush1.bf16.msra.mxu0 %v543
    %596 = vmatprep.subr.bf16.mxu0 0
    %597 = vmatpush1.bf16.msra.mxu0 %v544
    %598 = vmatprep.subr.bf16.mxu0 0
    %599 = vmatpush1.bf16.msra.mxu0 %v545
    %600 = vmatprep.subr.bf16.mxu0 0
    %601 = vmatpush1.bf16.msra.mxu0 %v546
    %602 = vmatprep.subr.bf16.mxu0 0
    %603 = vmatpush1.bf16.msra.mxu0 %v547
    %604 = vmatprep.subr.bf16.mxu0 0
    %605 = vmatpush1.bf16.msra.mxu0 %v548
    %606 = vmatprep.subr.bf16.mxu0 0
    %607 = vmatpush1.bf16.msra.mxu0 %v549
    %608 = vmatprep.subr.bf16.mxu0 0
    %609 = vmatpush1.bf16.msra.mxu0 %v550
    %610 = vmatprep.subr.bf16.mxu0 0
    %611 = vmatpush1.bf16.msra.mxu0 %v551
    %612 = vmatprep.subr.bf16.mxu0 0
    %613 = vmatpush1.bf16.msra.mxu0 %v552
    %614 = vmatprep.subr.bf16.mxu0 0
    %615 = vmatpush1.bf16.msra.mxu0 %v553
    %616 = vmatprep.subr.bf16.mxu0 0
    %617 = vmatpush1.bf16.msra.mxu0 %v554
    %618 = vmatprep.mubr.bf16.mxu0 %v447
    %619 = vmatmul.mubr.bf16.gmra.mrb[0].mxu0 %v446
    %v620 = vpop.f32.mrb[0].mxu0
    %v621 = vadd.f32 %v442, %v620
    %v622 = vpop.f32.mrb[0].mxu0
    %v623 = vpop.f32.mrb[0].mxu0
    %v624 = vpop.f32.mrb[0].mxu0
    %625 = vdwg.mxu0
    %626 = vmatprep.subr.bf16.mxu0 0
    %627 = vmatpush1.bf16.msra.mxu0 %v555
    %628 = vmatprep.subr.bf16.mxu0 0
    %629 = vmatpush1.bf16.msra.mxu0 %v556
    %630 = vmatprep.subr.bf16.mxu0 0
    %631 = vmatpush1.bf16.msra.mxu0 %v557
    %632 = vmatprep.subr.bf16.mxu0 0
    %633 = vmatpush1.bf16.msra.mxu0 %v558
    %634 = vmatprep.subr.bf16.mxu0 0
    %635 = vmatpush1.bf16.msra.mxu0 %v559
    %636 = vmatprep.subr.bf16.mxu0 0
    %637 = vmatpush1.bf16.msra.mxu0 %v560
    %638 = vmatprep.subr.bf16.mxu0 0
    %639 = vmatpush1.bf16.msra.mxu0 0
    %640 = vmatprep.subr.bf16.mxu0 0
    %641 = vmatpush1.bf16.msra.mxu0 0
    %642 = vmatprep.subr.bf16.mxu0 0
    %643 = vmatpush1.bf16.msra.mxu0 0
    %644 = vmatprep.subr.bf16.mxu0 0
    %645 = vmatpush1.bf16.msra.mxu0 0
    %646 = vmatprep.subr.bf16.mxu0 0
    %647 = vmatpush1.bf16.msra.mxu0 0
    %648 = vmatprep.subr.bf16.mxu0 0
    %649 = vmatpush1.bf16.msra.mxu0 0
    %650 = vmatprep.subr.bf16.mxu0 0
    %651 = vmatpush1.bf16.msra.mxu0 0
    %652 = vmatprep.subr.bf16.mxu0 0
    %653 = vmatpush1.bf16.msra.mxu0 0
    %654 = vmatprep.subr.bf16.mxu0 0
    %655 = vmatpush1.bf16.msra.mxu0 0
    %656 = vmatprep.subr.bf16.mxu0 0
    %657 = vmatpush1.bf16.msra.mxu0 0
    %658 = vmatprep.mubr.bf16.mxu0 0
    %659 = vmatmul.mubr.bf16.gmra.mrb[0].mxu0 %v584
    %v660 = vpop.f32.mrb[0].mxu0
    %v661 = vadd.f32 %v621, %v660
    %v662 = vpop.f32.mrb[0].mxu0
    %v663 = vpop.f32.mrb[0].mxu0
    %v664 = vpop.f32.mrb[0].mxu0
    %665 = vdwg.mxu0
    %v666 = vmax.f32 %v661, 0.0
    %v667 = vpack.c.bf16 %v666, %v666
    %v668 = vld [vmem:[%s1 + $0xd8] sm:$0xf]
    %v669 = vld [vmem:[%s1 + $0xdc] sm:$0xf]
    %v670 = vld [vmem:[%s1 + $0xe0] sm:$0xf]
    %v671 = vld [vmem:[%s1 + $0xe4] sm:$0xf]
    %v672 = vlaneseq
    %v673 = vshrl.u32 %v672, 7
    %v674 = vsub.s32 0, %v673
    %v675 = vrot.slane %v19, %v674
    %v680 = vunpack.c.l.b16 %v668
    %v681 = vunpack.c.l.b16 %v669
    %v682 = vunpack.c.l.b16 %v670
    %v683 = vunpack.c.l.b16 %v671
    %v684 = vpack.c.b16 %v681, %v680
    %v685 = vpack.c.b16 %v683, %v682
    %v689 = vsel %vm142, %v667, 0
    %691 = vmatprep.subr.bf16.mxu0 0
    %692 = vmatpush1.bf16.msra.mxu0 %v684
    %693 = vmatprep.subr.bf16.mxu0 0
    %694 = vmatpush1.bf16.msra.mxu0 %v685
    %695 = vmatprep.subr.bf16.mxu0 0
    %696 = vmatpush1.bf16.msra.mxu0 0
    %697 = vmatprep.subr.bf16.mxu0 0
    %698 = vmatpush1.bf16.msra.mxu0 0
    %699 = vmatprep.subr.bf16.mxu0 0
    %700 = vmatpush1.bf16.msra.mxu0 0
    %701 = vmatprep.subr.bf16.mxu0 0
    %702 = vmatpush1.bf16.msra.mxu0 0
    %703 = vmatprep.subr.bf16.mxu0 0
    %704 = vmatpush1.bf16.msra.mxu0 0
    %705 = vmatprep.subr.bf16.mxu0 0
    %706 = vmatpush1.bf16.msra.mxu0 0
    %707 = vmatprep.subr.bf16.mxu0 0
    %708 = vmatpush1.bf16.msra.mxu0 0
    %709 = vmatprep.subr.bf16.mxu0 0
    %710 = vmatpush1.bf16.msra.mxu0 0
    %711 = vmatprep.subr.bf16.mxu0 0
    %712 = vmatpush1.bf16.msra.mxu0 0
    %713 = vmatprep.subr.bf16.mxu0 0
    %714 = vmatpush1.bf16.msra.mxu0 0
    %715 = vmatprep.subr.bf16.mxu0 0
    %716 = vmatpush1.bf16.msra.mxu0 0
    %717 = vmatprep.subr.bf16.mxu0 0
    %718 = vmatpush1.bf16.msra.mxu0 0
    %719 = vmatprep.subr.bf16.mxu0 0
    %720 = vmatpush1.bf16.msra.mxu0 0
    %721 = vmatprep.subr.bf16.mxu0 0
    %722 = vmatpush1.bf16.msra.mxu0 0
    %723 = vmatprep.mubr.bf16.mxu0 0
    %724 = vmatmul.mubr.bf16.gmra.mrb[0].mxu0 %v689
    %v725 = vpop.f32.mrb[0].mxu0
    %v726 = vadd.f32 %v675, %v725
    %v727 = vpop.f32.mrb[0].mxu0
    %v728 = vpop.f32.mrb[0].mxu0
    %v729 = vpop.f32.mrb[0].mxu0
    %730 = vdwg.mxu0
    %v731 = vmax.f32 %v726, 0.0
    %vm732 = vcmask 254976
    %733 = vst.msk [vmem:[#allocation2] sm:$0x3] %vm732, %v731
    // Predicated region
    $region14: #{duet_forward.1} parent=1 // pred_check
      _
    $region15: #{duet_forward.1} parent=1 // pred_check_branch
      %735 = sbr.rel (0) target = $region17
    $region16: #{duet_forward.1} parent=1 // pred_region
      %s737 = ssub.s32 32, 32
      %738 = vsyncadd [#allocation3], %s737
      %s740 = sshll.u32 [#allocation2], 4
      %s741 = int_to_ptr.vmem [resolvable:$true] %s740
      %743 = dma.vmem_to_hbm [thread:$0]  %s741, 32, %s3, [#allocation3]
    $region17: #{duet_forward.1} parent=1 // pred_fallthru
      _
    // Predicated region
    $region18: #{duet_forward.1} parent=1 // pred_check
      _
    $region19: #{duet_forward.1} parent=1 // pred_check_branch
      %745 = sbr.rel (0) target = $region21
    $region20: #{duet_forward.1} parent=1 // pred_region
      %746 = dma.done [#allocation3], 32
    $region21: #{duet_forward.1} parent=1 // pred_fallthru
      _
    %747 = vsyncpa [#allocation3], 1

</llo_original>
